<compile_context>
chip_gen: v7x
topology: tpu7x:2x2x1
jax: 0.10.0
libtpu: 0.0.40
codegen_flags: <defaults>
</compile_context>

<pallas_src>
import jax
import jax.numpy as jnp
from jax.experimental import pallas as pl
from jax.experimental.pallas import tpu as pltpu


def _round_up(x, m):
    return ((x + m - 1) // m) * m


def _pcs_kernel(x_ref, w_ref, b_ref, o_ref):
    # x_ref: (bt, C, tN) VMEM   w_ref: (out_ch, C) VMEM (resident)
    # b_ref: (out_ch,)   SMEM   o_ref: (bt, out_ch, tN) VMEM
    w = w_ref[...]                                   # (out_ch, C)
    bt = x_ref.shape[0]
    out_ch = w_ref.shape[0]
    for bb in range(bt):                             # static unroll, bt is small
        acc = jnp.dot(w, x_ref[bb],
                      preferred_element_type=jnp.float32)        # (out_ch, tN)
        rows = [acc[o:o + 1, :] + b_ref[o] for o in range(out_ch)]  # scalar bias
        o_ref[bb] = jnp.concatenate(rows, axis=0).astype(o_ref.dtype)


def _pcs_tiling(B, C, N, itemsize, *, max_tile_n=2048, max_block_bytes=4 << 20,
                target_step_bytes=1 << 20, max_batch_tile=8):
    # Lane-dense N tile: multiple of 128, capped so the double-buffered x block
    # (2 * bt * C * tN * itemsize) stays far below scoped VMEM on all TPU gens.
    tn_cap = max(128, (max_block_bytes // max(1, C * itemsize)) // 128 * 128)
    tN = min(_round_up(N, 128), max_tile_n, tn_cap)
    # Fold batch elements into one grid step to amortize per-step overhead when
    # C*N is small; bound the fold so the static unroll stays tiny.
    bytes_per_b = C * tN * itemsize
    bt = int(max(1, min(B, max_batch_tile,
                        target_step_bytes // max(1, bytes_per_b))))
    return bt, tN


def pcs_forward(seed_features, weight, bias):
    """Conv1d(in_dim, 2, 1) over seed_features (B, C, N) -> (B, 2, N)."""
    B, C, N = seed_features.shape
    out_ch = weight.shape[0]
    dtype = seed_features.dtype
    itemsize = jnp.dtype(dtype).itemsize

    bt, tN = _pcs_tiling(B, C, N, itemsize)
    grid = (pl.cdiv(B, bt), pl.cdiv(N, tN))

    object_criteria = pl.pallas_call(
        _pcs_kernel,
        out_shape=jax.ShapeDtypeStruct((B, out_ch, N), dtype),
        grid=grid,
        in_specs=[
            # x tiles: pipelined / double-buffered over (batch-tile, N-tile).
            pl.BlockSpec((bt, C, tN), lambda b, n: (b, 0, n)),
            # weight: constant index_map -> resident in VMEM across all steps.
            pl.BlockSpec((out_ch, C), lambda b, n: (0, 0)),
            # bias: tiny, keep it as scalars in SMEM (no VMEM DMA stream).
            pl.BlockSpec(memory_space=pltpu.MemorySpace.SMEM),
        ],
        out_specs=pl.BlockSpec((bt, out_ch, tN), lambda b, n: (b, 0, n)),
        compiler_params=pltpu.CompilerParams(
            dimension_semantics=("parallel", "parallel")),
    )(seed_features, weight, bias)
    return object_criteria


def pcs_module(seed_features, end_points, weight, bias):
    """Mirrors PCS.forward: writes 'object_criteria' into end_points dict."""
    end_points = dict(end_points)
    end_points["object_criteria"] = pcs_forward(seed_features, weight, bias)
    return end_points


if __name__ == "__main__":
    # Small, deterministic shapes: batch=2, feat_channel=32, num_points=128.
    B, C, N = 2, 32, 128

    key = jax.random.PRNGKey(0)
    k_x, k_w, k_b = jax.random.split(key, 3)

    seed_features = jax.random.normal(k_x, (B, C, N), dtype=jnp.float32)
    # Deterministic synthetic Conv1d(C, 2, 1) parameters (shapes from __init__).
    bound = 1.0 / (C ** 0.5)
    weight = jax.random.uniform(k_w, (2, C), minval=-bound, maxval=bound,
                                dtype=jnp.float32)   # (out_ch, in_ch), k=1 conv
    bias = jax.random.uniform(k_b, (2,), minval=-bound, maxval=bound,
                              dtype=jnp.float32)

    end_points = pcs_module(seed_features, {}, weight, bias)
    out = jax.block_until_ready(end_points["object_criteria"])

    # Reference check against plain JAX (== Conv1d with kernel_size=1).
    ref = jnp.einsum("oc,bcn->bon", weight, seed_features) + bias[None, :, None]
    assert out.shape == (B, 2, N)
    assert jnp.allclose(out, ref, atol=1e-5, rtol=1e-5)

    print("KERNEL_OK")
</pallas_src>

<mosaic_0001>
module attributes {stable_mosaic.version = 11 : i64} {
  func.func @_pcs_kernel(%arg0: i32, %arg1: i32, %arg2: memref<2x32x128xf32, #tpu.memory_space<vmem>>, %arg3: memref<2x32xf32, #tpu.memory_space<vmem>>, %arg4: memref<2xf32, #tpu.memory_space<smem>>, %arg5: memref<2x2x128xf32, #tpu.memory_space<vmem>>) attributes {dimension_semantics = [#tpu.dimension_semantics<parallel>, #tpu.dimension_semantics<parallel>], iteration_bounds = array<i64: 1, 1>, scalar_prefetch = 0 : i64, scratch_operands = 0 : i64, tpu.core_type = #tpu.core_type<tc>, window_params = [{transform_indices = @transform_0, window_bounds = array<i64: 2, 32, 128>}, {pipeline_mode = #tpu.pipeline_mode<synchronous>, transform_indices = @transform_1, window_bounds = array<i64: 2, 32>}, {transform_indices = @transform_2, window_bounds = array<i64: 2>}, {transform_indices = @transform_3, window_bounds = array<i64: 2, 2, 128>}]} {
    %c0 = arith.constant 0 : index
    %c0_0 = arith.constant 0 : index
    %0 = vector.load %arg3[%c0, %c0_0] : memref<2x32xf32, #tpu.memory_space<vmem>>, vector<2x32xf32>
    %c0_1 = arith.constant 0 : index
    %c0_2 = arith.constant 0 : index
    %c0_3 = arith.constant 0 : index
    %1 = vector.load %arg2[%c0_1, %c0_2, %c0_3] : memref<2x32x128xf32, #tpu.memory_space<vmem>>, vector<1x32x128xf32>
    %2 = vector.shape_cast %1 : vector<1x32x128xf32> to vector<32x128xf32>
    %cst = arith.constant dense<0.000000e+00> : vector<2x128xf32>
    %3 = tpu.matmul %0, %2, %cst {dimension_numbers = #tpu.dot_dimension_numbers<[1], [0], [0], [1], [0, 0, 1, 1], [], []>} : vector<2x32xf32>, vector<32x128xf32>, vector<2x128xf32> -> vector<2x128xf32>
    %4 = vector.extract_strided_slice %3 {offsets = [0, 0], sizes = [1, 128], strides = [1, 1]} : vector<2x128xf32> to vector<1x128xf32>
    %c0_4 = arith.constant 0 : index
    %5 = memref.load %arg4[%c0_4] : memref<2xf32, #tpu.memory_space<smem>>
    %6 = vector.broadcast %5 : f32 to vector<1x128xf32>
    %7 = arith.addf %4, %6 : vector<1x128xf32>
    %8 = vector.extract_strided_slice %3 {offsets = [1, 0], sizes = [1, 128], strides = [1, 1]} : vector<2x128xf32> to vector<1x128xf32>
    %c1 = arith.constant 1 : index
    %9 = memref.load %arg4[%c1] : memref<2xf32, #tpu.memory_space<smem>>
    %10 = vector.broadcast %9 : f32 to vector<1x128xf32>
    %11 = arith.addf %8, %10 : vector<1x128xf32>
    %12 = tpu.concatenate %7, %11 in 0 : vector<1x128xf32>, vector<1x128xf32> -> vector<2x128xf32>
    %c0_5 = arith.constant 0 : index
    %c0_6 = arith.constant 0 : index
    %c0_7 = arith.constant 0 : index
    %13 = vector.load %arg5[%c0_5, %c0_6, %c0_7] : memref<2x2x128xf32, #tpu.memory_space<vmem>>, vector<1x2x128xf32>
    %14 = vector.shape_cast %13 : vector<1x2x128xf32> to vector<2x128xf32>
    %15 = vector.shape_cast %12 : vector<2x128xf32> to vector<1x2x128xf32>
    tpu.vector_store %arg5[%c0_5, %c0_6, %c0_7], %15 {strides = array<i32>} : memref<2x2x128xf32, #tpu.memory_space<vmem>>, vector<1x2x128xf32>,
    %c1_8 = arith.constant 1 : index
    %c0_9 = arith.constant 0 : index
    %c0_10 = arith.constant 0 : index
    %16 = vector.load %arg2[%c1_8, %c0_9, %c0_10] : memref<2x32x128xf32, #tpu.memory_space<vmem>>, vector<1x32x128xf32>
    %17 = vector.shape_cast %16 : vector<1x32x128xf32> to vector<32x128xf32>
    %cst_11 = arith.constant dense<0.000000e+00> : vector<2x128xf32>
    %18 = tpu.matmul %0, %17, %cst_11 {dimension_numbers = #tpu.dot_dimension_numbers<[1], [0], [0], [1], [0, 0, 1, 1], [], []>} : vector<2x32xf32>, vector<32x128xf32>, vector<2x128xf32> -> vector<2x128xf32>
    %19 = vector.extract_strided_slice %18 {offsets = [0, 0], sizes = [1, 128], strides = [1, 1]} : vector<2x128xf32> to vector<1x128xf32>
    %c0_12 = arith.constant 0 : index
    %20 = memref.load %arg4[%c0_12] : memref<2xf32, #tpu.memory_space<smem>>
    %21 = vector.broadcast %20 : f32 to vector<1x128xf32>
    %22 = arith.addf %19, %21 : vector<1x128xf32>
    %23 = vector.extract_strided_slice %18 {offsets = [1, 0], sizes = [1, 128], strides = [1, 1]} : vector<2x128xf32> to vector<1x128xf32>
    %c1_13 = arith.constant 1 : index
    %24 = memref.load %arg4[%c1_13] : memref<2xf32, #tpu.memory_space<smem>>
    %25 = vector.broadcast %24 : f32 to vector<1x128xf32>
    %26 = arith.addf %23, %25 : vector<1x128xf32>
    %27 = tpu.concatenate %22, %26 in 0 : vector<1x128xf32>, vector<1x128xf32> -> vector<2x128xf32>
    %c1_14 = arith.constant 1 : index
    %c0_15 = arith.constant 0 : index
    %c0_16 = arith.constant 0 : index
    %28 = vector.load %arg5[%c1_14, %c0_15, %c0_16] : memref<2x2x128xf32, #tpu.memory_space<vmem>>, vector<1x2x128xf32>
    %29 = vector.shape_cast %28 : vector<1x2x128xf32> to vector<2x128xf32>
    %30 = vector.shape_cast %27 : vector<2x128xf32> to vector<1x2x128xf32>
    tpu.vector_store %arg5[%c1_14, %c0_15, %c0_16], %30 {strides = array<i32>} : memref<2x2x128xf32, #tpu.memory_space<vmem>>, vector<1x2x128xf32>,
    return
  }
  func.func @transform_0(%arg0: i32, %arg1: i32) -> (i32, i32, i32) {
    %c0_i32 = arith.constant 0 : i32
    %c0_i32_0 = arith.constant 0 : i32
    return %arg0, %c0_i32, %arg1 : i32, i32, i32
  }
  func.func @transform_1(%arg0: i32, %arg1: i32) -> (i32, i32) {
    %c0_i32 = arith.constant 0 : i32
    %c0_i32_0 = arith.constant 0 : i32
    %c0_i32_1 = arith.constant 0 : i32
    return %c0_i32, %c0_i32_0 : i32, i32
  }
  func.func @transform_2(%arg0: i32, %arg1: i32) -> i32 {
    %c0_i32 = arith.constant 0 : i32
    %c0_i32_0 = arith.constant 0 : i32
    return %c0_i32 : i32
  }
  func.func @transform_3(%arg0: i32, %arg1: i32) -> (i32, i32, i32) {
    %c0_i32 = arith.constant 0 : i32
    %c0_i32_0 = arith.constant 0 : i32
    return %arg0, %c0_i32, %arg1 : i32, i32, i32
  }
}

</mosaic_0001>

<llo_original>
// kernel: tpu_custom_call.1
$region0: #{tpu_custom_call.1}
  #allocation0 [shape = 'u32[]', space=smem, size = 0x4, offset = 0x4, fixed_abs, tag = 'smem constant byte address 0x4 - core index']
  #allocation1 [shape = 'u32[144,128]{1,0:T(1,128)}', space=vmem, size = 0x12000, scoped, tag = 'internal scratch']
  %s0 = inlined_call_operand.hbm [shape: f32[2,32,128], index: 0, kind: input, shape index: {}]
  %s1 = inlined_call_operand.vmem [shape: f32[2,32], index: 1, kind: input, shape index: {}]
  %s2 = inlined_call_operand.vmem [shape: f32[2], index: 2, kind: input, shape index: {}]
  %s3 = inlined_call_operand.hbm [shape: f32[2,2,128], index: 3, kind: output, shape index: {}]
  %s4 = sld [smem:[#allocation0]]
  $region30: #{tpu_custom_call.1} parent=0
    _
  %s6 = ssub.s32 1, %s4
  %s7 = scalar_select 0, %s6, %s4
  $region1: #{tpu_custom_call.1} parent=0
    #allocation2 [shape = 'u8[32768]{0}', space=vmem, size = 0x8000, scoped, tag = 'input window, operand 0, single buffered']
    #allocation3 [shape = 's32[1]{0}', space=sflag, size = 0x4, scoped, tag = 'scoped memory for tpu_custom_call.1']
    #allocation4 [shape = 's32[1]{0}', space=sflag, size = 0x4, scoped, tag = 'scoped memory for tpu_custom_call.1']
    #allocation5 [shape = 's32[1]{0}', space=sflag, size = 0x4, scoped, tag = 'scoped memory for tpu_custom_call.1']
    #allocation6 [shape = 'u8[512]{0}', space=smem, size = 0x200, scoped, tag = 'input window, operand 2, single buffered']
    #allocation7 [shape = 'u8[2048]{0}', space=vmem, size = 0x800, scoped, tag = 'output window, operand 0, single buffered']
    %8 = vsyncpa [#allocation3], 0
    %9 = vsyncpa [#allocation5], 0
    %10 = vsyncpa [#allocation4], 0
    // Predicated region
    $region2: #{tpu_custom_call.1} parent=1 // pred_check
      _
    $region3: #{tpu_custom_call.1} parent=1 // pred_check_branch
      %12 = sbr.rel (0) target = $region5
    $region4: #{tpu_custom_call.1} parent=1 // pred_region
      %s14 = ssub.s32 1024, 1024
      %15 = vsyncadd [#allocation3], %s14
      %s16 = sshll.u32 [#allocation2], 4
      %s17 = int_to_ptr.vmem [resolvable:$true] %s16
      %22 = dma.hbm_to_vmem [thread:$0]  %s0, 1024, %s17, [#allocation3], 128, 128, 8
    $region5: #{tpu_custom_call.1} parent=1 // pred_fallthru
      _
    // Predicated region
    $region6: #{tpu_custom_call.1} parent=1 // pred_check
      _
    $region7: #{tpu_custom_call.1} parent=1 // pred_check_branch
      %24 = sbr.rel (0) target = $region9
    $region8: #{tpu_custom_call.1} parent=1 // pred_region
      _
    $region9: #{tpu_custom_call.1} parent=1 // pred_fallthru
      _
    // Predicated region
    $region10: #{tpu_custom_call.1} parent=1 // pred_check
      _
    $region11: #{tpu_custom_call.1} parent=1 // pred_check_branch
      %26 = sbr.rel (0) target = $region13
    $region12: #{tpu_custom_call.1} parent=1 // pred_region
      %s28 = ssub.s32 16, 16
      %29 = vsyncadd [#allocation5], %s28
      %s31 = sshll.u32 %s2, 4
      %s32 = int_to_ptr.vmem [resolvable:$true] %s31
      %34 = dma.vmem_to_smem %s32, 16, [#allocation6], [#allocation5]
    $region13: #{tpu_custom_call.1} parent=1 // pred_fallthru
      _
    // Predicated region
    $region14: #{tpu_custom_call.1} parent=1 // pred_check
      _
    $region15: #{tpu_custom_call.1} parent=1 // pred_check_branch
      %36 = sbr.rel (0) target = $region17
    $region16: #{tpu_custom_call.1} parent=1 // pred_region
      %37 = dma.done [#allocation3], 1024
    $region17: #{tpu_custom_call.1} parent=1 // pred_fallthru
      _
    // Predicated region
    $region18: #{tpu_custom_call.1} parent=1 // pred_check
      _
    $region19: #{tpu_custom_call.1} parent=1 // pred_check_branch
      %39 = sbr.rel (0) target = $region21
    $region20: #{tpu_custom_call.1} parent=1 // pred_region
      %40 = dma.done [#allocation5], 16
    $region21: #{tpu_custom_call.1} parent=1 // pred_fallthru
      _
    %41 = sfence
    %v42 = vld [vmem:[%s1] sm:$0x3]
    %v43 = vld [vmem:[#allocation2] sm:$0xff]
    %v44 = vld [vmem:[#allocation2 + $0x8] sm:$0xff]
    %v45 = vld [vmem:[#allocation2 + $0x10] sm:$0xff]
    %v46 = vld [vmem:[#allocation2 + $0x18] sm:$0xff]
    %vm47 = vcmask 261120
    %v49 = vsel %vm47, %v42, 0
    %51 = vmatprep.subr.mxu0 0.0
    %52 = vmatpush1.msra.mxu0 %v43
    %53 = vmatprep.subr.mxu0 0.0
    %54 = vmatpush1.msra.mxu0 %v44
    %55 = vmatprep.subr.mxu0 0.0
    %56 = vmatpush1.msra.mxu0 %v45
    %57 = vmatprep.subr.mxu0 0.0
    %58 = vmatpush1.msra.mxu0 %v46
    %59 = vmatprep.subr.mxu0 0.0
    %60 = vmatpush1.msra.mxu0 0.0
    %61 = vmatprep.subr.mxu0 0.0
    %62 = vmatpush1.msra.mxu0 0.0
    %63 = vmatprep.subr.mxu0 0.0
    %64 = vmatpush1.msra.mxu0 0.0
    %65 = vmatprep.subr.mxu0 0.0
    %66 = vmatpush1.msra.mxu0 0.0
    %67 = vmatprep.subr.mxu0 0.0
    %68 = vmatpush1.msra.mxu0 0.0
    %69 = vmatprep.subr.mxu0 0.0
    %70 = vmatpush1.msra.mxu0 0.0
    %71 = vmatprep.subr.mxu0 0.0
    %72 = vmatpush1.msra.mxu0 0.0
    %73 = vmatprep.subr.mxu0 0.0
    %74 = vmatpush1.msra.mxu0 0.0
    %75 = vmatprep.subr.mxu0 0.0
    %76 = vmatpush1.msra.mxu0 0.0
    %77 = vmatprep.subr.mxu0 0.0
    %78 = vmatpush1.msra.mxu0 0.0
    %79 = vmatprep.subr.mxu0 0.0
    %80 = vmatpush1.msra.mxu0 0.0
    %81 = vmatprep.subr.mxu0 0.0
    %82 = vmatpush1.msra.mxu0 0.0
    %83 = vmatprep.subr.mxu0 0.0
    %84 = vmatpush1.msra.mxu0 0.0
    %85 = vmatprep.subr.mxu0 0.0
    %86 = vmatpush1.msra.mxu0 0.0
    %87 = vmatprep.subr.mxu0 0.0
    %88 = vmatpush1.msra.mxu0 0.0
    %89 = vmatprep.subr.mxu0 0.0
    %90 = vmatpush1.msra.mxu0 0.0
    %91 = vmatprep.subr.mxu0 0.0
    %92 = vmatpush1.msra.mxu0 0.0
    %93 = vmatprep.subr.mxu0 0.0
    %94 = vmatpush1.msra.mxu0 0.0
    %95 = vmatprep.subr.mxu0 0.0
    %96 = vmatpush1.msra.mxu0 0.0
    %97 = vmatprep.subr.mxu0 0.0
    %98 = vmatpush1.msra.mxu0 0.0
    %99 = vmatprep.subr.mxu0 0.0
    %100 = vmatpush1.msra.mxu0 0.0
    %101 = vmatprep.subr.mxu0 0.0
    %102 = vmatpush1.msra.mxu0 0.0
    %103 = vmatprep.subr.mxu0 0.0
    %104 = vmatpush1.msra.mxu0 0.0
    %105 = vmatprep.subr.mxu0 0.0
    %106 = vmatpush1.msra.mxu0 0.0
    %107 = vmatprep.subr.mxu0 0.0
    %108 = vmatpush1.msra.mxu0 0.0
    %109 = vmatprep.subr.mxu0 0.0
    %110 = vmatpush1.msra.mxu0 0.0
    %111 = vmatprep.subr.mxu0 0.0
    %112 = vmatpush1.msra.mxu0 0.0
    %113 = vmatprep.subr.mxu0 0.0
    %114 = vmatpush1.msra.mxu0 0.0
    %115 = vmatprep.mubr.f32.mxu0 0.0
    %116 = vmatmul.mubr.f32.gmra.mrb[0].mxu0 %v49
    %v117 = vpop.f32.mrb[0].mxu0
    %v118 = vadd.f32 0.0, %v117
    %v119 = vpop.f32.mrb[0].mxu0
    %120 = vdwg.mxu0
    %s121 = sld [smem:[#allocation6]]
    %v122 = vstv %s121
    %v123 = vadd.f32 %v118, %v122
    %s124 = sld [smem:[#allocation6 + $0x1]]
    %v125 = vstv %s124
    %v126 = vadd.f32 %v118, %v125
    %vm127 = vcmask 1040384
    %v128 = vsel %vm127, %v123, %v126
    %129 = vst [vmem:[#allocation7] sm:$0x3] %v128
    %s130 = scalar_lea.vmem [#allocation2], 32
    %v131 = vld [vmem:[%s130] sm:$0xff]
    %v132 = vld [vmem:[%s130 + $0x8] sm:$0xff]
    %v133 = vld [vmem:[%s130 + $0x10] sm:$0xff]
    %v134 = vld [vmem:[%s130 + $0x18] sm:$0xff]
    %135 = vmatprep.subr.mxu0 0.0
    %136 = vmatpush1.msra.mxu0 %v131
    %137 = vmatprep.subr.mxu0 0.0
    %138 = vmatpush1.msra.mxu0 %v132
    %139 = vmatprep.subr.mxu0 0.0
    %140 = vmatpush1.msra.mxu0 %v133
    %141 = vmatprep.subr.mxu0 0.0
    %142 = vmatpush1.msra.mxu0 %v134
    %143 = vmatprep.subr.mxu0 0.0
    %144 = vmatpush1.msra.mxu0 0.0
    %145 = vmatprep.subr.mxu0 0.0
    %146 = vmatpush1.msra.mxu0 0.0
    %147 = vmatprep.subr.mxu0 0.0
    %148 = vmatpush1.msra.mxu0 0.0
    %149 = vmatprep.subr.mxu0 0.0
    %150 = vmatpush1.msra.mxu0 0.0
    %151 = vmatprep.subr.mxu0 0.0
    %152 = vmatpush1.msra.mxu0 0.0
    %153 = vmatprep.subr.mxu0 0.0
    %154 = vmatpush1.msra.mxu0 0.0
    %155 = vmatprep.subr.mxu0 0.0
    %156 = vmatpush1.msra.mxu0 0.0
    %157 = vmatprep.subr.mxu0 0.0
    %158 = vmatpush1.msra.mxu0 0.0
    %159 = vmatprep.subr.mxu0 0.0
    %160 = vmatpush1.msra.mxu0 0.0
    %161 = vmatprep.subr.mxu0 0.0
    %162 = vmatpush1.msra.mxu0 0.0
    %163 = vmatprep.subr.mxu0 0.0
    %164 = vmatpush1.msra.mxu0 0.0
    %165 = vmatprep.subr.mxu0 0.0
    %166 = vmatpush1.msra.mxu0 0.0
    %167 = vmatprep.subr.mxu0 0.0
    %168 = vmatpush1.msra.mxu0 0.0
    %169 = vmatprep.subr.mxu0 0.0
    %170 = vmatpush1.msra.mxu0 0.0
    %171 = vmatprep.subr.mxu0 0.0
    %172 = vmatpush1.msra.mxu0 0.0
    %173 = vmatprep.subr.mxu0 0.0
    %174 = vmatpush1.msra.mxu0 0.0
    %175 = vmatprep.subr.mxu0 0.0
    %176 = vmatpush1.msra.mxu0 0.0
    %177 = vmatprep.subr.mxu0 0.0
    %178 = vmatpush1.msra.mxu0 0.0
    %179 = vmatprep.subr.mxu0 0.0
    %180 = vmatpush1.msra.mxu0 0.0
    %181 = vmatprep.subr.mxu0 0.0
    %182 = vmatpush1.msra.mxu0 0.0
    %183 = vmatprep.subr.mxu0 0.0
    %184 = vmatpush1.msra.mxu0 0.0
    %185 = vmatprep.subr.mxu0 0.0
    %186 = vmatpush1.msra.mxu0 0.0
    %187 = vmatprep.subr.mxu0 0.0
    %188 = vmatpush1.msra.mxu0 0.0
    %189 = vmatprep.subr.mxu0 0.0
    %190 = vmatpush1.msra.mxu0 0.0
    %191 = vmatprep.subr.mxu0 0.0
    %192 = vmatpush1.msra.mxu0 0.0
    %193 = vmatprep.subr.mxu0 0.0
    %194 = vmatpush1.msra.mxu0 0.0
    %195 = vmatprep.subr.mxu0 0.0
    %196 = vmatpush1.msra.mxu0 0.0
    %197 = vmatprep.subr.mxu0 0.0
    %198 = vmatpush1.msra.mxu0 0.0
    %199 = vmatprep.mubr.f32.mxu0 0.0
    %200 = vmatmul.mubr.f32.gmra.mrb[0].mxu0 %v49
    %v201 = vpop.f32.mrb[0].mxu0
    %v202 = vadd.f32 0.0, %v201
    %v203 = vpop.f32.mrb[0].mxu0
    %204 = vdwg.mxu0
    %s205 = sld [smem:[#allocation6]]
    %v206 = vstv %s205
    %v207 = vadd.f32 %v202, %v206
    %s208 = sld [smem:[#allocation6 + $0x1]]
    %v209 = vstv %s208
    %v210 = vadd.f32 %v202, %v209
    %v211 = vsel %vm127, %v207, %v210
    %s212 = scalar_lea.vmem [#allocation7], 2
    %213 = vst [vmem:[%s212] sm:$0x3] %v211
    // Predicated region
    $region22: #{tpu_custom_call.1} parent=1 // pred_check
      _
    $region23: #{tpu_custom_call.1} parent=1 // pred_check_branch
      %215 = sbr.rel (0) target = $region25
    $region24: #{tpu_custom_call.1} parent=1 // pred_region
      %s217 = ssub.s32 64, 64
      %218 = vsyncadd [#allocation4], %s217
      %s219 = sshll.u32 [#allocation7], 4
      %s220 = int_to_ptr.vmem [resolvable:$true] %s219
      %225 = dma.vmem_to_hbm [thread:$0]  %s220, 64, %s3, [#allocation4], 32, 32, 2
    $region25: #{tpu_custom_call.1} parent=1 // pred_fallthru
      _
    // Predicated region
    $region26: #{tpu_custom_call.1} parent=1 // pred_check
      _
    $region27: #{tpu_custom_call.1} parent=1 // pred_check_branch
      %227 = sbr.rel (0) target = $region29
    $region28: #{tpu_custom_call.1} parent=1 // pred_region
      %228 = dma.done [#allocation4], 64
    $region29: #{tpu_custom_call.1} parent=1 // pred_fallthru
      _
    %229 = vsyncpa [#allocation3], 1
    %230 = vsyncpa [#allocation4], 1
    %231 = vsyncpa [#allocation5], 1

</llo_original>
